<compile_context>
chip_gen: v7x
topology: tpu7x:2x2x1
jax: 0.10.0
libtpu: 0.0.40
codegen_flags: <defaults>
</compile_context>

<pallas_src>
import functools

import jax
import jax.numpy as jnp
import numpy as np
from jax.experimental import pallas as pl
from jax.experimental.pallas import tpu as pltpu


def _round_up(v, m):
    return (v + m - 1) // m * m


def _basic_block_kernel(x_ref, w1_ref, w2_ref, wd_ref, b_ref, edge_ref, o_ref,
                        stage1_ref, stage2_ref, patches_ref, *, W, padl):
    cin = x_ref.shape[1]
    L = x_ref.shape[2]                       # H * W (pixels on lanes)
    cout = o_ref.shape[1]
    cpad1 = stage1_ref.shape[0]              # round_up(cin, 8)
    cpad2 = stage2_ref.shape[0]              # round_up(cout, 8)
    lw = L + 2 * padl

    # Horizontal-edge 0/1 masks (bf16), precomputed in the wrapper; shared by both convs.
    mask_l = edge_ref[0:1, :]                # zero where output column x == 0   (dx == 0 taps)
    mask_r = edge_ref[1:2, :]                # zero where output column x == W-1 (dx == 2 taps)

    # Zero the flat lane halos (vertical padding) and the channel-pad rows of the staging
    # buffers.  O(W) / O(L) strips only; interiors are fully overwritten below.  Re-zeroed
    # every step so the "parallel" batch axis stays safe under megacore sharding.
    stage1_ref[:, 0:padl] = jnp.zeros((cpad1, padl), jnp.bfloat16)
    stage1_ref[:, padl + L:lw] = jnp.zeros((cpad1, padl), jnp.bfloat16)
    stage2_ref[:, 0:padl] = jnp.zeros((cpad2, padl), jnp.bfloat16)
    stage2_ref[:, padl + L:lw] = jnp.zeros((cpad2, padl), jnp.bfloat16)
    if cpad1 > cin:
        stage1_ref[cin:cpad1, :] = jnp.zeros((cpad1 - cin, lw), jnp.bfloat16)
    if cpad2 > cout:
        stage2_ref[cout:cpad2, :] = jnp.zeros((cpad2 - cout, lw), jnp.bfloat16)

    # Stage the NCHW-native input tile (pixels on lanes) in bf16; cast fused into the store.
    stage1_ref[0:cin, padl:padl + L] = x_ref[0].astype(jnp.bfloat16)

    def conv3x3(stage, cpad, w_ref):
        # Full im2col: 9 shifted (and, for dx != 1, edge-masked) slices of the flat staged
        # activation are written into the (9*cpad, L) bf16 patch matrix, then ONE wide-K
        # bf16 MXU matmul produces (cout, L) f32 -- accumulation happens inside the MXU.
        for dy in range(3):
            for dx in range(3):
                off = padl + (dy - 1) * W + (dx - 1)
                patch = stage[:, off:off + L]                    # (cpad, L) bf16
                if dx == 0:
                    patch = patch * mask_l
                elif dx == 2:
                    patch = patch * mask_r
                tap = dy * 3 + dx
                patches_ref[tap * cpad:(tap + 1) * cpad, :] = patch
        return jnp.dot(w_ref[...], patches_ref[0:9 * cpad, :],
                       preferred_element_type=jnp.float32)       # (cout, L) f32

    # Packed BN shifts: column 0 -> bn1, 1 -> bn2, 2 -> bn_downsample (scales are folded
    # into the weights wrapper-side).
    b1 = b_ref[:, 0:1]
    b2 = b_ref[:, 1:2]
    bd = b_ref[:, 2:3]

    # conv1 (+ folded BN1 scale) -> shift -> relu, restaged in bf16 for conv2.
    y1 = jnp.maximum(conv3x3(stage1_ref, cpad1, w1_ref) + b1, 0.0)
    stage2_ref[0:cout, padl:padl + L] = y1.astype(jnp.bfloat16)

    # conv2 (+ folded BN2 scale) -> shift.
    y2 = conv3x3(stage2_ref, cpad2, w2_ref) + b2

    # Downsample branch on the identity: 1x1 conv (+ folded BN scale) -> shift.
    ident = jnp.dot(wd_ref[...], stage1_ref[:, padl:padl + L],
                    preferred_element_type=jnp.float32) + bd

    # Residual add + relu; lane-dense (L >= 256) store, NCHW-native output layout.
    o_ref[0] = jnp.maximum(y2 + ident, 0.0).astype(o_ref.dtype)


def _fold_bn(gamma, beta, mean, var, eps=1e-5):
    scale = gamma / jnp.sqrt(var + eps)
    shift = beta - mean * scale
    return scale.astype(jnp.float32), shift.astype(jnp.float32)


def resnet_basic_block_forward(x_nchw, p):
    N, Cin, H, W = x_nchw.shape
    Cout = p['w1'].shape[-1]
    L = H * W
    PADL = W + 1                              # flat lane halo (covers +-W +- 1 tap shifts)
    cpad1 = _round_up(Cin, 8)
    cpad2 = _round_up(Cout, 8)

    # ---- fold BN (inference mode) and prepare MXU-ready weights (f32 fold, then bf16) ----
    s1, b1 = _fold_bn(*p['bn1'])
    s2, b2 = _fold_bn(*p['bn2'])
    sd, bd = _fold_bn(*p['bnd'])

    def conv_weight(w_hwio, scale, cpad):
        c_in = w_hwio.shape[2]
        w = w_hwio.astype(jnp.float32) * scale                 # fold BN scale (per out ch)
        w = jnp.transpose(w, (3, 0, 1, 2))                     # (Cout, 3, 3, Cin)
        w = jnp.pad(w, ((0, 0), (0, 0), (0, 0), (0, cpad - c_in)))
        return w.reshape(Cout, 9 * cpad).astype(jnp.bfloat16)  # rows match im2col order

    w1k = conv_weight(p['w1'], s1, cpad1)                      # (Cout, 9*cpad1)
    w2k = conv_weight(p['w2'], s2, cpad2)                      # (Cout, 9*cpad2)
    wdk = jnp.pad(p['wd'].astype(jnp.float32).T * sd[:, None],
                  ((0, 0), (0, cpad1 - Cin))).astype(jnp.bfloat16)  # (Cout, cpad1)
    bpack = jnp.stack([b1, b2, bd], axis=1).astype(jnp.float32)     # (Cout, 3)

    # 0/1 horizontal-edge masks over the flat pixel index (precomputed, avoids in-kernel mod).
    col = np.arange(L) % W
    edge_mask = jnp.asarray(np.stack([(col != 0), (col != W - 1)]).astype(np.float32),
                            dtype=jnp.bfloat16)                # (2, L)

    # NCHW consumed natively: (N, Cin, H, W) -> (N, Cin, H*W) is a free reshape (no transpose).
    x_flat = x_nchw.reshape(N, Cin, L).astype(jnp.float32)

    kernel = functools.partial(_basic_block_kernel, W=W, padl=PADL)

    out_flat = pl.pallas_call(
        kernel,
        out_shape=jax.ShapeDtypeStruct((N, Cout, L), jnp.float32),
        grid_spec=pltpu.PrefetchScalarGridSpec(
            num_scalar_prefetch=0,
            grid=(N,),
            in_specs=[
                pl.BlockSpec((1, Cin, L), lambda n: (n, 0, 0)),
                pl.BlockSpec((Cout, 9 * cpad1), lambda n: (0, 0)),
                pl.BlockSpec((Cout, 9 * cpad2), lambda n: (0, 0)),
                pl.BlockSpec((Cout, cpad1), lambda n: (0, 0)),
                pl.BlockSpec((Cout, 3), lambda n: (0, 0)),
                pl.BlockSpec((2, L), lambda n: (0, 0)),
            ],
            out_specs=pl.BlockSpec((1, Cout, L), lambda n: (n, 0, 0)),
            scratch_shapes=[
                pltpu.VMEM((cpad1, L + 2 * PADL), jnp.bfloat16),        # staged input
                pltpu.VMEM((cpad2, L + 2 * PADL), jnp.bfloat16),        # staged conv1 act
                pltpu.VMEM((9 * max(cpad1, cpad2), L), jnp.bfloat16),   # shared im2col patches
            ],
        ),
        compiler_params=pltpu.CompilerParams(
            dimension_semantics=("parallel",),
            vmem_limit_bytes=32 * 1024 * 1024,
        ),
    )(x_flat, w1k, w2k, wdk, bpack, edge_mask)

    # Free reshape back to NCHW -- no transpose / extra HBM round trip.
    return out_flat.reshape(N, Cout, H, W)


def _ref_forward(x_nchw, p, eps=1e-5):
    """Pure-JAX f32 reference (inference-mode BN), for correctness check."""
    x = jnp.transpose(x_nchw, (0, 2, 3, 1)).astype(jnp.float32)

    def conv(inp, w):
        return jax.lax.conv_general_dilated(
            inp, w, window_strides=(1, 1), padding='SAME',
            dimension_numbers=('NHWC', 'HWIO', 'NHWC'))

    def bn(inp, gamma, beta, mean, var):
        return (inp - mean) / jnp.sqrt(var + eps) * gamma + beta

    y = jax.nn.relu(bn(conv(x, p['w1']), *p['bn1']))
    y = bn(conv(y, p['w2']), *p['bn2'])
    ident = bn(conv(x, p['wd'].reshape(1, 1, *p['wd'].shape)), *p['bnd'])
    out = jax.nn.relu(y + ident)
    return jnp.transpose(out, (0, 3, 1, 2))


def _make_params(key, cin, cout):
    ks = jax.random.split(key, 16)

    def bn_params(k0, k1, k2, k3):
        return (jax.random.uniform(k0, (cout,), jnp.float32, 0.5, 1.5),   # gamma
                0.1 * jax.random.normal(k1, (cout,), jnp.float32),        # beta
                0.1 * jax.random.normal(k2, (cout,), jnp.float32),        # running_mean
                jax.random.uniform(k3, (cout,), jnp.float32, 0.5, 1.5))   # running_var

    return {
        'w1': 0.1 * jax.random.normal(ks[0], (3, 3, cin, cout), jnp.float32),   # HWIO
        'w2': 0.1 * jax.random.normal(ks[1], (3, 3, cout, cout), jnp.float32),  # HWIO
        'wd': 0.1 * jax.random.normal(ks[2], (cin, cout), jnp.float32),         # 1x1 (IO)
        'bn1': bn_params(ks[3], ks[4], ks[5], ks[6]),
        'bn2': bn_params(ks[7], ks[8], ks[9], ks[10]),
        'bnd': bn_params(ks[11], ks[12], ks[13], ks[14]),
    }


if __name__ == "__main__":
    key = jax.random.PRNGKey(0)
    k_x, k_p = jax.random.split(key)

    N, Cin, H, W = 2, 4, 16, 16
    Cout = 8

    x = jax.random.normal(k_x, (N, Cin, H, W), jnp.float32)   # PyTorch NCHW input
    params = _make_params(k_p, Cin, Cout)

    out = resnet_basic_block_forward(x, params)
    out = jax.block_until_ready(out)

    ref = jax.block_until_ready(_ref_forward(x, params))
    # Tolerance accounts for the bf16 MXU path (weights + activations in bf16,
    # f32 accumulation) versus the pure-f32 reference.
    np.testing.assert_allclose(np.asarray(out), np.asarray(ref), rtol=5e-2, atol=5e-2)

    print("KERNEL_OK")
</pallas_src>

<mosaic_0001>
module attributes {stable_mosaic.version = 11 : i64} {
  func.func @_basic_block_kernel(%arg0: i32, %arg1: memref<1x4x256xf32, #tpu.memory_space<vmem>>, %arg2: memref<8x72xbf16, #tpu.memory_space<vmem>>, %arg3: memref<8x72xbf16, #tpu.memory_space<vmem>>, %arg4: memref<8x8xbf16, #tpu.memory_space<vmem>>, %arg5: memref<8x3xf32, #tpu.memory_space<vmem>>, %arg6: memref<2x256xbf16, #tpu.memory_space<vmem>>, %arg7: memref<1x8x256xf32, #tpu.memory_space<vmem>>, %arg8: memref<8x290xbf16, #tpu.memory_space<vmem>>, %arg9: memref<8x290xbf16, #tpu.memory_space<vmem>>, %arg10: memref<72x256xbf16, #tpu.memory_space<vmem>>) attributes {dimension_semantics = [#tpu.dimension_semantics<parallel>], iteration_bounds = array<i64: 2>, scalar_prefetch = 0 : i64, scratch_operands = 3 : i64, tpu.core_type = #tpu.core_type<tc>, window_params = [{transform_indices = @transform_0, window_bounds = array<i64: 1, 4, 256>}, {pipeline_mode = #tpu.pipeline_mode<synchronous>, transform_indices = @transform_1, window_bounds = array<i64: 8, 72>}, {pipeline_mode = #tpu.pipeline_mode<synchronous>, transform_indices = @transform_2, window_bounds = array<i64: 8, 72>}, {pipeline_mode = #tpu.pipeline_mode<synchronous>, transform_indices = @transform_3, window_bounds = array<i64: 8, 8>}, {pipeline_mode = #tpu.pipeline_mode<synchronous>, transform_indices = @transform_4, window_bounds = array<i64: 8, 3>}, {pipeline_mode = #tpu.pipeline_mode<synchronous>, transform_indices = @transform_5, window_bounds = array<i64: 2, 256>}, {transform_indices = @transform_6, window_bounds = array<i64: 1, 8, 256>}]} {
    %c0 = arith.constant 0 : index
    %c0_0 = arith.constant 0 : index
    %0 = vector.load %arg6[%c0, %c0_0] : memref<2x256xbf16, #tpu.memory_space<vmem>>, vector<1x256xbf16>
    %c1 = arith.constant 1 : index
    %c0_1 = arith.constant 0 : index
    %1 = vector.load %arg6[%c1, %c0_1] : memref<2x256xbf16, #tpu.memory_space<vmem>>, vector<1x256xbf16>
    %cst = arith.constant 0.000000e+00 : bf16
    %2 = vector.broadcast %cst : bf16 to vector<8x17xbf16>
    %c0_2 = arith.constant 0 : index
    %c0_3 = arith.constant 0 : index
    %3 = vector.load %arg8[%c0_2, %c0_3] : memref<8x290xbf16, #tpu.memory_space<vmem>>, vector<8x17xbf16>
    tpu.vector_store %arg8[%c0_2, %c0_3], %2 {strides = array<i32>} : memref<8x290xbf16, #tpu.memory_space<vmem>>, vector<8x17xbf16>,
    %cst_4 = arith.constant 0.000000e+00 : bf16
    %4 = vector.broadcast %cst_4 : bf16 to vector<8x17xbf16>
    %c0_5 = arith.constant 0 : index
    %c273 = arith.constant 273 : index
    %5 = vector.load %arg8[%c0_5, %c273] : memref<8x290xbf16, #tpu.memory_space<vmem>>, vector<8x17xbf16>
    tpu.vector_store %arg8[%c0_5, %c273], %4 {strides = array<i32>} : memref<8x290xbf16, #tpu.memory_space<vmem>>, vector<8x17xbf16>,
    %cst_6 = arith.constant 0.000000e+00 : bf16
    %6 = vector.broadcast %cst_6 : bf16 to vector<8x17xbf16>
    %c0_7 = arith.constant 0 : index
    %c0_8 = arith.constant 0 : index
    %7 = vector.load %arg9[%c0_7, %c0_8] : memref<8x290xbf16, #tpu.memory_space<vmem>>, vector<8x17xbf16>
    tpu.vector_store %arg9[%c0_7, %c0_8], %6 {strides = array<i32>} : memref<8x290xbf16, #tpu.memory_space<vmem>>, vector<8x17xbf16>,
    %cst_9 = arith.constant 0.000000e+00 : bf16
    %8 = vector.broadcast %cst_9 : bf16 to vector<8x17xbf16>
    %c0_10 = arith.constant 0 : index
    %c273_11 = arith.constant 273 : index
    %9 = vector.load %arg9[%c0_10, %c273_11] : memref<8x290xbf16, #tpu.memory_space<vmem>>, vector<8x17xbf16>
    tpu.vector_store %arg9[%c0_10, %c273_11], %8 {strides = array<i32>} : memref<8x290xbf16, #tpu.memory_space<vmem>>, vector<8x17xbf16>,
    %cst_12 = arith.constant 0.000000e+00 : bf16
    %10 = vector.broadcast %cst_12 : bf16 to vector<4x290xbf16>
    %c4 = arith.constant 4 : index
    %c0_13 = arith.constant 0 : index
    %11 = vector.load %arg8[%c4, %c0_13] : memref<8x290xbf16, #tpu.memory_space<vmem>>, vector<4x290xbf16>
    tpu.vector_store %arg8[%c4, %c0_13], %10 {strides = array<i32>} : memref<8x290xbf16, #tpu.memory_space<vmem>>, vector<4x290xbf16>,
    %c0_14 = arith.constant 0 : index
    %c0_15 = arith.constant 0 : index
    %c0_16 = arith.constant 0 : index
    %12 = vector.load %arg1[%c0_14, %c0_15, %c0_16] : memref<1x4x256xf32, #tpu.memory_space<vmem>>, vector<1x4x256xf32>
    %13 = vector.shape_cast %12 : vector<1x4x256xf32> to vector<4x256xf32>
    %14 = arith.truncf %13 : vector<4x256xf32> to vector<4x256xbf16>
    %c0_17 = arith.constant 0 : index
    %c17 = arith.constant 17 : index
    %15 = vector.load %arg8[%c0_17, %c17] : memref<8x290xbf16, #tpu.memory_space<vmem>>, vector<4x256xbf16>
    tpu.vector_store %arg8[%c0_17, %c17], %14 {strides = array<i32>} : memref<8x290xbf16, #tpu.memory_space<vmem>>, vector<4x256xbf16>,
    %c0_18 = arith.constant 0 : index
    %c0_19 = arith.constant 0 : index
    %16 = vector.load %arg5[%c0_18, %c0_19] : memref<8x3xf32, #tpu.memory_space<vmem>>, vector<8x1xf32>
    %c0_20 = arith.constant 0 : index
    %c1_21 = arith.constant 1 : index
    %17 = vector.load %arg5[%c0_20, %c1_21] : memref<8x3xf32, #tpu.memory_space<vmem>>, vector<8x1xf32>
    %c0_22 = arith.constant 0 : index
    %c2 = arith.constant 2 : index
    %18 = vector.load %arg5[%c0_22, %c2] : memref<8x3xf32, #tpu.memory_space<vmem>>, vector<8x1xf32>
    %c0_23 = arith.constant 0 : index
    %c0_24 = arith.constant 0 : index
    %19 = vector.load %arg8[%c0_23, %c0_24] : memref<8x290xbf16, #tpu.memory_space<vmem>>, vector<8x256xbf16>
    %20 = vector.broadcast %0 : vector<1x256xbf16> to vector<8x256xbf16>
    %21 = arith.mulf %19, %20 : vector<8x256xbf16>
    %c0_25 = arith.constant 0 : index
    %c0_26 = arith.constant 0 : index
    %22 = vector.load %arg10[%c0_25, %c0_26] : memref<72x256xbf16, #tpu.memory_space<vmem>>, vector<8x256xbf16>
    tpu.vector_store %arg10[%c0_25, %c0_26], %21 {strides = array<i32>} : memref<72x256xbf16, #tpu.memory_space<vmem>>, vector<8x256xbf16>,
    %c0_27 = arith.constant 0 : index
    %c1_28 = arith.constant 1 : index
    %23 = vector.load %arg8[%c0_27, %c1_28] : memref<8x290xbf16, #tpu.memory_space<vmem>>, vector<8x256xbf16>
    %c8 = arith.constant 8 : index
    %c0_29 = arith.constant 0 : index
    %24 = vector.load %arg10[%c8, %c0_29] : memref<72x256xbf16, #tpu.memory_space<vmem>>, vector<8x256xbf16>
    tpu.vector_store %arg10[%c8, %c0_29], %23 {strides = array<i32>} : memref<72x256xbf16, #tpu.memory_space<vmem>>, vector<8x256xbf16>,
    %c0_30 = arith.constant 0 : index
    %c2_31 = arith.constant 2 : index
    %25 = vector.load %arg8[%c0_30, %c2_31] : memref<8x290xbf16, #tpu.memory_space<vmem>>, vector<8x256xbf16>
    %26 = vector.broadcast %1 : vector<1x256xbf16> to vector<8x256xbf16>
    %27 = arith.mulf %25, %26 : vector<8x256xbf16>
    %c16 = arith.constant 16 : index
    %c0_32 = arith.constant 0 : index
    %28 = vector.load %arg10[%c16, %c0_32] : memref<72x256xbf16, #tpu.memory_space<vmem>>, vector<8x256xbf16>
    tpu.vector_store %arg10[%c16, %c0_32], %27 {strides = array<i32>} : memref<72x256xbf16, #tpu.memory_space<vmem>>, vector<8x256xbf16>,
    %c0_33 = arith.constant 0 : index
    %c16_34 = arith.constant 16 : index
    %29 = vector.load %arg8[%c0_33, %c16_34] : memref<8x290xbf16, #tpu.memory_space<vmem>>, vector<8x256xbf16>
    %30 = vector.broadcast %0 : vector<1x256xbf16> to vector<8x256xbf16>
    %31 = arith.mulf %29, %30 : vector<8x256xbf16>
    %c24 = arith.constant 24 : index
    %c0_35 = arith.constant 0 : index
    %32 = vector.load %arg10[%c24, %c0_35] : memref<72x256xbf16, #tpu.memory_space<vmem>>, vector<8x256xbf16>
    tpu.vector_store %arg10[%c24, %c0_35], %31 {strides = array<i32>} : memref<72x256xbf16, #tpu.memory_space<vmem>>, vector<8x256xbf16>,
    %c0_36 = arith.constant 0 : index
    %c17_37 = arith.constant 17 : index
    %33 = vector.load %arg8[%c0_36, %c17_37] : memref<8x290xbf16, #tpu.memory_space<vmem>>, vector<8x256xbf16>
    %c32 = arith.constant 32 : index
    %c0_38 = arith.constant 0 : index
    %34 = vector.load %arg10[%c32, %c0_38] : memref<72x256xbf16, #tpu.memory_space<vmem>>, vector<8x256xbf16>
    tpu.vector_store %arg10[%c32, %c0_38], %33 {strides = array<i32>} : memref<72x256xbf16, #tpu.memory_space<vmem>>, vector<8x256xbf16>,
    %c0_39 = arith.constant 0 : index
    %c18 = arith.constant 18 : index
    %35 = vector.load %arg8[%c0_39, %c18] : memref<8x290xbf16, #tpu.memory_space<vmem>>, vector<8x256xbf16>
    %36 = vector.broadcast %1 : vector<1x256xbf16> to vector<8x256xbf16>
    %37 = arith.mulf %35, %36 : vector<8x256xbf16>
    %c40 = arith.constant 40 : index
    %c0_40 = arith.constant 0 : index
    %38 = vector.load %arg10[%c40, %c0_40] : memref<72x256xbf16, #tpu.memory_space<vmem>>, vector<8x256xbf16>
    tpu.vector_store %arg10[%c40, %c0_40], %37 {strides = array<i32>} : memref<72x256xbf16, #tpu.memory_space<vmem>>, vector<8x256xbf16>,
    %c0_41 = arith.constant 0 : index
    %c32_42 = arith.constant 32 : index
    %39 = vector.load %arg8[%c0_41, %c32_42] : memref<8x290xbf16, #tpu.memory_space<vmem>>, vector<8x256xbf16>
    %40 = vector.broadcast %0 : vector<1x256xbf16> to vector<8x256xbf16>
    %41 = arith.mulf %39, %40 : vector<8x256xbf16>
    %c48 = arith.constant 48 : index
    %c0_43 = arith.constant 0 : index
    %42 = vector.load %arg10[%c48, %c0_43] : memref<72x256xbf16, #tpu.memory_space<vmem>>, vector<8x256xbf16>
    tpu.vector_store %arg10[%c48, %c0_43], %41 {strides = array<i32>} : memref<72x256xbf16, #tpu.memory_space<vmem>>, vector<8x256xbf16>,
    %c0_44 = arith.constant 0 : index
    %c33 = arith.constant 33 : index
    %43 = vector.load %arg8[%c0_44, %c33] : memref<8x290xbf16, #tpu.memory_space<vmem>>, vector<8x256xbf16>
    %c56 = arith.constant 56 : index
    %c0_45 = arith.constant 0 : index
    %44 = vector.load %arg10[%c56, %c0_45] : memref<72x256xbf16, #tpu.memory_space<vmem>>, vector<8x256xbf16>
    tpu.vector_store %arg10[%c56, %c0_45], %43 {strides = array<i32>} : memref<72x256xbf16, #tpu.memory_space<vmem>>, vector<8x256xbf16>,
    %c0_46 = arith.constant 0 : index
    %c34 = arith.constant 34 : index
    %45 = vector.load %arg8[%c0_46, %c34] : memref<8x290xbf16, #tpu.memory_space<vmem>>, vector<8x256xbf16>
    %46 = vector.broadcast %1 : vector<1x256xbf16> to vector<8x256xbf16>
    %47 = arith.mulf %45, %46 : vector<8x256xbf16>
    %c64 = arith.constant 64 : index
    %c0_47 = arith.constant 0 : index
    %48 = vector.load %arg10[%c64, %c0_47] : memref<72x256xbf16, #tpu.memory_space<vmem>>, vector<8x256xbf16>
    tpu.vector_store %arg10[%c64, %c0_47], %47 {strides = array<i32>} : memref<72x256xbf16, #tpu.memory_space<vmem>>, vector<8x256xbf16>,
    %c0_48 = arith.constant 0 : index
    %c0_49 = arith.constant 0 : index
    %49 = vector.load %arg2[%c0_48, %c0_49] : memref<8x72xbf16, #tpu.memory_space<vmem>>, vector<8x72xbf16>
    %c0_50 = arith.constant 0 : index
    %c0_51 = arith.constant 0 : index
    %50 = vector.load %arg10[%c0_50, %c0_51] : memref<72x256xbf16, #tpu.memory_space<vmem>>, vector<72x256xbf16>
    %cst_52 = arith.constant dense<0.000000e+00> : vector<8x256xf32>
    %51 = tpu.matmul %49, %50, %cst_52 {dimension_numbers = #tpu.dot_dimension_numbers<[1], [0], [0], [1], [0, 0, 1, 1], [], []>} : vector<8x72xbf16>, vector<72x256xbf16>, vector<8x256xf32> -> vector<8x256xf32>
    %52 = vector.broadcast %16 : vector<8x1xf32> to vector<8x256xf32>
    %53 = arith.addf %51, %52 : vector<8x256xf32>
    %cst_53 = arith.constant 0.000000e+00 : f32
    %54 = vector.broadcast %cst_53 : f32 to vector<8x256xf32>
    %55 = arith.maximumf %53, %54 : vector<8x256xf32>
    %56 = arith.truncf %55 : vector<8x256xf32> to vector<8x256xbf16>
    %c0_54 = arith.constant 0 : index
    %c17_55 = arith.constant 17 : index
    %57 = vector.load %arg9[%c0_54, %c17_55] : memref<8x290xbf16, #tpu.memory_space<vmem>>, vector<8x256xbf16>
    tpu.vector_store %arg9[%c0_54, %c17_55], %56 {strides = array<i32>} : memref<8x290xbf16, #tpu.memory_space<vmem>>, vector<8x256xbf16>,
    %c0_56 = arith.constant 0 : index
    %c0_57 = arith.constant 0 : index
    %58 = vector.load %arg9[%c0_56, %c0_57] : memref<8x290xbf16, #tpu.memory_space<vmem>>, vector<8x256xbf16>
    %59 = vector.broadcast %0 : vector<1x256xbf16> to vector<8x256xbf16>
    %60 = arith.mulf %58, %59 : vector<8x256xbf16>
    %c0_58 = arith.constant 0 : index
    %c0_59 = arith.constant 0 : index
    %61 = vector.load %arg10[%c0_58, %c0_59] : memref<72x256xbf16, #tpu.memory_space<vmem>>, vector<8x256xbf16>
    tpu.vector_store %arg10[%c0_58, %c0_59], %60 {strides = array<i32>} : memref<72x256xbf16, #tpu.memory_space<vmem>>, vector<8x256xbf16>,
    %c0_60 = arith.constant 0 : index
    %c1_61 = arith.constant 1 : index
    %62 = vector.load %arg9[%c0_60, %c1_61] : memref<8x290xbf16, #tpu.memory_space<vmem>>, vector<8x256xbf16>
    %c8_62 = arith.constant 8 : index
    %c0_63 = arith.constant 0 : index
    %63 = vector.load %arg10[%c8_62, %c0_63] : memref<72x256xbf16, #tpu.memory_space<vmem>>, vector<8x256xbf16>
    tpu.vector_store %arg10[%c8_62, %c0_63], %62 {strides = array<i32>} : memref<72x256xbf16, #tpu.memory_space<vmem>>, vector<8x256xbf16>,
    %c0_64 = arith.constant 0 : index
    %c2_65 = arith.constant 2 : index
    %64 = vector.load %arg9[%c0_64, %c2_65] : memref<8x290xbf16, #tpu.memory_space<vmem>>, vector<8x256xbf16>
    %65 = vector.broadcast %1 : vector<1x256xbf16> to vector<8x256xbf16>
    %66 = arith.mulf %64, %65 : vector<8x256xbf16>
    %c16_66 = arith.constant 16 : index
    %c0_67 = arith.constant 0 : index
    %67 = vector.load %arg10[%c16_66, %c0_67] : memref<72x256xbf16, #tpu.memory_space<vmem>>, vector<8x256xbf16>
    tpu.vector_store %arg10[%c16_66, %c0_67], %66 {strides = array<i32>} : memref<72x256xbf16, #tpu.memory_space<vmem>>, vector<8x256xbf16>,
    %c0_68 = arith.constant 0 : index
    %c16_69 = arith.constant 16 : index
    %68 = vector.load %arg9[%c0_68, %c16_69] : memref<8x290xbf16, #tpu.memory_space<vmem>>, vector<8x256xbf16>
    %69 = vector.broadcast %0 : vector<1x256xbf16> to vector<8x256xbf16>
    %70 = arith.mulf %68, %69 : vector<8x256xbf16>
    %c24_70 = arith.constant 24 : index
    %c0_71 = arith.constant 0 : index
    %71 = vector.load %arg10[%c24_70, %c0_71] : memref<72x256xbf16, #tpu.memory_space<vmem>>, vector<8x256xbf16>
    tpu.vector_store %arg10[%c24_70, %c0_71], %70 {strides = array<i32>} : memref<72x256xbf16, #tpu.memory_space<vmem>>, vector<8x256xbf16>,
    %c0_72 = arith.constant 0 : index
    %c17_73 = arith.constant 17 : index
    %72 = vector.load %arg9[%c0_72, %c17_73] : memref<8x290xbf16, #tpu.memory_space<vmem>>, vector<8x256xbf16>
    %c32_74 = arith.constant 32 : index
    %c0_75 = arith.constant 0 : index
    %73 = vector.load %arg10[%c32_74, %c0_75] : memref<72x256xbf16, #tpu.memory_space<vmem>>, vector<8x256xbf16>
    tpu.vector_store %arg10[%c32_74, %c0_75], %72 {strides = array<i32>} : memref<72x256xbf16, #tpu.memory_space<vmem>>, vector<8x256xbf16>,
    %c0_76 = arith.constant 0 : index
    %c18_77 = arith.constant 18 : index
    %74 = vector.load %arg9[%c0_76, %c18_77] : memref<8x290xbf16, #tpu.memory_space<vmem>>, vector<8x256xbf16>
    %75 = vector.broadcast %1 : vector<1x256xbf16> to vector<8x256xbf16>
    %76 = arith.mulf %74, %75 : vector<8x256xbf16>
    %c40_78 = arith.constant 40 : index
    %c0_79 = arith.constant 0 : index
    %77 = vector.load %arg10[%c40_78, %c0_79] : memref<72x256xbf16, #tpu.memory_space<vmem>>, vector<8x256xbf16>
    tpu.vector_store %arg10[%c40_78, %c0_79], %76 {strides = array<i32>} : memref<72x256xbf16, #tpu.memory_space<vmem>>, vector<8x256xbf16>,
    %c0_80 = arith.constant 0 : index
    %c32_81 = arith.constant 32 : index
    %78 = vector.load %arg9[%c0_80, %c32_81] : memref<8x290xbf16, #tpu.memory_space<vmem>>, vector<8x256xbf16>
    %79 = vector.broadcast %0 : vector<1x256xbf16> to vector<8x256xbf16>
    %80 = arith.mulf %78, %79 : vector<8x256xbf16>
    %c48_82 = arith.constant 48 : index
    %c0_83 = arith.constant 0 : index
    %81 = vector.load %arg10[%c48_82, %c0_83] : memref<72x256xbf16, #tpu.memory_space<vmem>>, vector<8x256xbf16>
    tpu.vector_store %arg10[%c48_82, %c0_83], %80 {strides = array<i32>} : memref<72x256xbf16, #tpu.memory_space<vmem>>, vector<8x256xbf16>,
    %c0_84 = arith.constant 0 : index
    %c33_85 = arith.constant 33 : index
    %82 = vector.load %arg9[%c0_84, %c33_85] : memref<8x290xbf16, #tpu.memory_space<vmem>>, vector<8x256xbf16>
    %c56_86 = arith.constant 56 : index
    %c0_87 = arith.constant 0 : index
    %83 = vector.load %arg10[%c56_86, %c0_87] : memref<72x256xbf16, #tpu.memory_space<vmem>>, vector<8x256xbf16>
    tpu.vector_store %arg10[%c56_86, %c0_87], %82 {strides = array<i32>} : memref<72x256xbf16, #tpu.memory_space<vmem>>, vector<8x256xbf16>,
    %c0_88 = arith.constant 0 : index
    %c34_89 = arith.constant 34 : index
    %84 = vector.load %arg9[%c0_88, %c34_89] : memref<8x290xbf16, #tpu.memory_space<vmem>>, vector<8x256xbf16>
    %85 = vector.broadcast %1 : vector<1x256xbf16> to vector<8x256xbf16>
    %86 = arith.mulf %84, %85 : vector<8x256xbf16>
    %c64_90 = arith.constant 64 : index
    %c0_91 = arith.constant 0 : index
    %87 = vector.load %arg10[%c64_90, %c0_91] : memref<72x256xbf16, #tpu.memory_space<vmem>>, vector<8x256xbf16>
    tpu.vector_store %arg10[%c64_90, %c0_91], %86 {strides = array<i32>} : memref<72x256xbf16, #tpu.memory_space<vmem>>, vector<8x256xbf16>,
    %c0_92 = arith.constant 0 : index
    %c0_93 = arith.constant 0 : index
    %88 = vector.load %arg3[%c0_92, %c0_93] : memref<8x72xbf16, #tpu.memory_space<vmem>>, vector<8x72xbf16>
    %c0_94 = arith.constant 0 : index
    %c0_95 = arith.constant 0 : index
    %89 = vector.load %arg10[%c0_94, %c0_95] : memref<72x256xbf16, #tpu.memory_space<vmem>>, vector<72x256xbf16>
    %cst_96 = arith.constant dense<0.000000e+00> : vector<8x256xf32>
    %90 = tpu.matmul %88, %89, %cst_96 {dimension_numbers = #tpu.dot_dimension_numbers<[1], [0], [0], [1], [0, 0, 1, 1], [], []>} : vector<8x72xbf16>, vector<72x256xbf16>, vector<8x256xf32> -> vector<8x256xf32>
    %91 = vector.broadcast %17 : vector<8x1xf32> to vector<8x256xf32>
    %92 = arith.addf %90, %91 : vector<8x256xf32>
    %c0_97 = arith.constant 0 : index
    %c0_98 = arith.constant 0 : index
    %93 = vector.load %arg4[%c0_97, %c0_98] : memref<8x8xbf16, #tpu.memory_space<vmem>>, vector<8x8xbf16>
    %c0_99 = arith.constant 0 : index
    %c17_100 = arith.constant 17 : index
    %94 = vector.load %arg8[%c0_99, %c17_100] : memref<8x290xbf16, #tpu.memory_space<vmem>>, vector<8x256xbf16>
    %cst_101 = arith.constant dense<0.000000e+00> : vector<8x256xf32>
    %95 = tpu.matmul %93, %94, %cst_101 {dimension_numbers = #tpu.dot_dimension_numbers<[1], [0], [0], [1], [0, 0, 1, 1], [], []>} : vector<8x8xbf16>, vector<8x256xbf16>, vector<8x256xf32> -> vector<8x256xf32>
    %96 = vector.broadcast %18 : vector<8x1xf32> to vector<8x256xf32>
    %97 = arith.addf %95, %96 : vector<8x256xf32>
    %98 = arith.addf %92, %97 : vector<8x256xf32>
    %cst_102 = arith.constant 0.000000e+00 : f32
    %99 = vector.broadcast %cst_102 : f32 to vector<8x256xf32>
    %100 = arith.maximumf %98, %99 : vector<8x256xf32>
    %c0_103 = arith.constant 0 : index
    %c0_104 = arith.constant 0 : index
    %c0_105 = arith.constant 0 : index
    %101 = vector.load %arg7[%c0_103, %c0_104, %c0_105] : memref<1x8x256xf32, #tpu.memory_space<vmem>>, vector<1x8x256xf32>
    %102 = vector.shape_cast %101 : vector<1x8x256xf32> to vector<8x256xf32>
    %103 = vector.shape_cast %100 : vector<8x256xf32> to vector<1x8x256xf32>
    tpu.vector_store %arg7[%c0_103, %c0_104, %c0_105], %103 {strides = array<i32>} : memref<1x8x256xf32, #tpu.memory_space<vmem>>, vector<1x8x256xf32>,
    return
  }
  func.func @transform_0(%arg0: i32) -> (i32, i32, i32) {
    %c0_i32 = arith.constant 0 : i32
    %c0_i32_0 = arith.constant 0 : i32
    %c0_i32_1 = arith.constant 0 : i32
    return %arg0, %c0_i32, %c0_i32_0 : i32, i32, i32
  }
  func.func @transform_1(%arg0: i32) -> (i32, i32) {
    %c0_i32 = arith.constant 0 : i32
    %c0_i32_0 = arith.constant 0 : i32
    %c0_i32_1 = arith.constant 0 : i32
    return %c0_i32, %c0_i32_0 : i32, i32
  }
  func.func @transform_2(%arg0: i32) -> (i32, i32) {
    %c0_i32 = arith.constant 0 : i32
    %c0_i32_0 = arith.constant 0 : i32
    %c0_i32_1 = arith.constant 0 : i32
    return %c0_i32, %c0_i32_0 : i32, i32
  }
  func.func @transform_3(%arg0: i32) -> (i32, i32) {
    %c0_i32 = arith.constant 0 : i32
    %c0_i32_0 = arith.constant 0 : i32
    %c0_i32_1 = arith.constant 0 : i32
    return %c0_i32, %c0_i32_0 : i32, i32
  }
  func.func @transform_4(%arg0: i32) -> (i32, i32) {
    %c0_i32 = arith.constant 0 : i32
    %c0_i32_0 = arith.constant 0 : i32
    %c0_i32_1 = arith.constant 0 : i32
    return %c0_i32, %c0_i32_0 : i32, i32
  }
  func.func @transform_5(%arg0: i32) -> (i32, i32) {
    %c0_i32 = arith.constant 0 : i32
    %c0_i32_0 = arith.constant 0 : i32
    %c0_i32_1 = arith.constant 0 : i32
    return %c0_i32, %c0_i32_0 : i32, i32
  }
  func.func @transform_6(%arg0: i32) -> (i32, i32, i32) {
    %c0_i32 = arith.constant 0 : i32
    %c0_i32_0 = arith.constant 0 : i32
    %c0_i32_1 = arith.constant 0 : i32
    return %arg0, %c0_i32, %c0_i32_0 : i32, i32, i32
  }
}

</mosaic_0001>

<llo_original>
// kernel: tpu_custom_call.1
$region0: #{tpu_custom_call.1}
  #allocation0 [shape = 'u32[]', space=smem, size = 0x4, offset = 0x4, fixed_abs, tag = 'smem constant byte address 0x4 - core index']
  #allocation1 [shape = 'u32[144,128]{1,0:T(1,128)}', space=vmem, size = 0x12000, scoped, tag = 'internal scratch']
  #allocation2 [shape = 'bf16[8,290]{1,0:T(8,128)(2,1)}', space=vmem, size = 0x1800, scoped, tag = 'scratch operand']
  #allocation3 [shape = 'bf16[8,290]{1,0:T(8,128)(2,1)}', space=vmem, size = 0x1800, scoped, tag = 'scratch operand']
  #allocation4 [shape = 'bf16[72,256]{1,0:T(8,128)(2,1)}', space=vmem, size = 0x9000, scoped, tag = 'scratch operand']
  %s0 = inlined_call_operand.hbm [shape: f32[2,4,256], index: 0, kind: input, shape index: {}]
  %s1 = inlined_call_operand.vmem [shape: bf16[8,72], index: 1, kind: input, shape index: {}]
  %s2 = inlined_call_operand.vmem [shape: bf16[8,72], index: 2, kind: input, shape index: {}]
  %s3 = inlined_call_operand.vmem [shape: bf16[8,8], index: 3, kind: input, shape index: {}]
  %s4 = inlined_call_operand.vmem [shape: f32[8,3], index: 4, kind: input, shape index: {}]
  %s5 = inlined_call_operand.vmem [shape: bf16[2,256], index: 5, kind: input, shape index: {}]
  %s6 = inlined_call_operand.hbm [shape: f32[2,8,256], index: 6, kind: output, shape index: {}]
  %s7 = sld [smem:[#allocation0]]
  $region61: #{tpu_custom_call.1} parent=0
    _
  %s9 = ssub.s32 1, %s7
  %s10 = scalar_select 0, %s9, %s7
  $region1: #{tpu_custom_call.1} parent=0
    #allocation5 [shape = 'u8[8192]{0}', space=vmem, size = 0x2000, scoped, tag = 'input window, operand 0']
    #allocation6 [shape = 's32[2]{0}', space=sflag, size = 0x8, scoped, tag = 'scoped memory for tpu_custom_call.1']
    #allocation7 [shape = 's32[2]{0}', space=sflag, size = 0x8, scoped, tag = 'scoped memory for tpu_custom_call.1']
    #allocation8 [shape = 'u8[16384]{0}', space=vmem, size = 0x4000, scoped, tag = 'output window, operand 0']
    %11 = vsyncpa [#allocation6], 0
    %s12 = scalar_lea.sflag [#allocation6], 1
    %13 = vsyncpa %s12, 0
    %14 = vsyncpa [#allocation7], 0
    %s15 = scalar_lea.sflag [#allocation7], 1
    %16 = vsyncpa %s15, 0
    loop: start=0, step=1, limit=4
    $region2: #{tpu_custom_call.1} parent=1 // loop_pre_header
      _
    $region3: #{tpu_custom_call.1} parent=1 // loop_header
      %s18 = sphi 0, %s22
      %p19 = scmp.ge.s32.totalorder %s18, 4
      %s28 = sphi 0, %s30
      %s31 = sphi 0, %s28
      %s32 = sphi 0, %s31
      %s48 = sphi 0, %s32
      %s52 = sphi 0, %s52
      %s54 = sphi 0, %s52
      %s55 = sphi 0, %s54
      %s69 = sphi 0, %s55
      %s73 = sphi 0, %s73
      %s75 = sphi 0, %s73
      %s76 = sphi 0, %s75
      %s90 = sphi 0, %s76
      %s94 = sphi 0, %s94
      %s96 = sphi 0, %s94
      %s97 = sphi 0, %s96
      %s111 = sphi 0, %s97
      %s115 = sphi 0, %s115
      %s117 = sphi 0, %s115
      %s118 = sphi 0, %s117
      %s132 = sphi 0, %s118
      %s136 = sphi 0, %s136
      %s138 = sphi 0, %s136
      %s139 = sphi 0, %s138
      %s153 = sphi 0, %s139
      %s159 = sphi 0, %s161
      %s162 = sphi 0, %s159
      %s163 = sphi 0, %s162
      %s179 = sphi 0, %s163
    $region4: #{tpu_custom_call.1} parent=1 // loop_header_branch
      %21 = sbr.rel (%p19) target = $region8
    $region5: #{tpu_custom_call.1} parent=1 // loop_body
      %s23 = ssub.s32 %s18, 1
      %s24 = ssub.s32 %s18, 2
      %s25 = sadd.s32 %s18, 1
      %s26 = ssub.s32 %s18, %s25
      %p27 = scmp.eq.s32.totalorder %s26, 0
      %s29 = sadd.s32 %s28, 1
      %s30 = scalar_select %p27, %s28, %s29
      %p33 = pneg %p27
      %p34 = scmp.eq.s32.totalorder %s18, 1
      %p35 = por %p33, %p34
      %p36 = scmp.ne.s32.totalorder %s28, %s31
      %p37 = scmp.eq.s32.totalorder %s18, 0
      %p38 = por %p36, %p37
      %p39 = scmp.ne.s32.totalorder %s28, %s31
      %p40 = scmp.eq.s32.totalorder %s23, 1
      %p41 = por %p39, %p40
      %p42 = scmp.ne.s32.totalorder %s31, %s32
      %p43 = scmp.eq.s32.totalorder %s23, 0
      %p44 = por %p42, %p43
      %p45 = scmp.ne.s32.totalorder %s31, %s32
      %p46 = scmp.eq.s32.totalorder %s24, 1
      %p47 = por %p45, %p46
      %p49 = scmp.ne.s32.totalorder %s32, %s48
      %p50 = scmp.eq.s32.totalorder %s24, 0
      %p51 = por %p49, %p50
      %s53 = sadd.s32 %s52, 1
      %p56 = scmp.eq.s32.totalorder %s18, 1
      %p57 = scmp.ne.s32.totalorder %s52, %s54
      %p58 = scmp.eq.s32.totalorder %s18, 0
      %p59 = por %p57, %p58
      %p60 = scmp.ne.s32.totalorder %s52, %s54
      %p61 = scmp.eq.s32.totalorder %s23, 1
      %p62 = por %p60, %p61
      %p63 = scmp.ne.s32.totalorder %s54, %s55
      %p64 = scmp.eq.s32.totalorder %s23, 0
      %p65 = por %p63, %p64
      %p66 = scmp.ne.s32.totalorder %s54, %s55
      %p67 = scmp.eq.s32.totalorder %s24, 1
      %p68 = por %p66, %p67
      %p70 = scmp.ne.s32.totalorder %s55, %s69
      %p71 = scmp.eq.s32.totalorder %s24, 0
      %p72 = por %p70, %p71
      %s74 = sadd.s32 %s73, 1
      %p77 = scmp.eq.s32.totalorder %s18, 1
      %p78 = scmp.ne.s32.totalorder %s73, %s75
      %p79 = scmp.eq.s32.totalorder %s18, 0
      %p80 = por %p78, %p79
      %p81 = scmp.ne.s32.totalorder %s73, %s75
      %p82 = scmp.eq.s32.totalorder %s23, 1
      %p83 = por %p81, %p82
      %p84 = scmp.ne.s32.totalorder %s75, %s76
      %p85 = scmp.eq.s32.totalorder %s23, 0
      %p86 = por %p84, %p85
      %p87 = scmp.ne.s32.totalorder %s75, %s76
      %p88 = scmp.eq.s32.totalorder %s24, 1
      %p89 = por %p87, %p88
      %p91 = scmp.ne.s32.totalorder %s76, %s90
      %p92 = scmp.eq.s32.totalorder %s24, 0
      %p93 = por %p91, %p92
      %s95 = sadd.s32 %s94, 1
      %p98 = scmp.eq.s32.totalorder %s18, 1
      %p99 = scmp.ne.s32.totalorder %s94, %s96
      %p100 = scmp.eq.s32.totalorder %s18, 0
      %p101 = por %p99, %p100
      %p102 = scmp.ne.s32.totalorder %s94, %s96
      %p103 = scmp.eq.s32.totalorder %s23, 1
      %p104 = por %p102, %p103
      %p105 = scmp.ne.s32.totalorder %s96, %s97
      %p106 = scmp.eq.s32.totalorder %s23, 0
      %p107 = por %p105, %p106
      %p108 = scmp.ne.s32.totalorder %s96, %s97
      %p109 = scmp.eq.s32.totalorder %s24, 1
      %p110 = por %p108, %p109
      %p112 = scmp.ne.s32.totalorder %s97, %s111
      %p113 = scmp.eq.s32.totalorder %s24, 0
      %p114 = por %p112, %p113
      %s116 = sadd.s32 %s115, 1
      %p119 = scmp.eq.s32.totalorder %s18, 1
      %p120 = scmp.ne.s32.totalorder %s115, %s117
      %p121 = scmp.eq.s32.totalorder %s18, 0
      %p122 = por %p120, %p121
      %p123 = scmp.ne.s32.totalorder %s115, %s117
      %p124 = scmp.eq.s32.totalorder %s23, 1
      %p125 = por %p123, %p124
      %p126 = scmp.ne.s32.totalorder %s117, %s118
      %p127 = scmp.eq.s32.totalorder %s23, 0
      %p128 = por %p126, %p127
      %p129 = scmp.ne.s32.totalorder %s117, %s118
      %p130 = scmp.eq.s32.totalorder %s24, 1
      %p131 = por %p129, %p130
      %p133 = scmp.ne.s32.totalorder %s118, %s132
      %p134 = scmp.eq.s32.totalorder %s24, 0
      %p135 = por %p133, %p134
      %s137 = sadd.s32 %s136, 1
      %p140 = scmp.eq.s32.totalorder %s18, 1
      %p141 = scmp.ne.s32.totalorder %s136, %s138
      %p142 = scmp.eq.s32.totalorder %s18, 0
      %p143 = por %p141, %p142
      %p144 = scmp.ne.s32.totalorder %s136, %s138
      %p145 = scmp.eq.s32.totalorder %s23, 1
      %p146 = por %p144, %p145
      %p147 = scmp.ne.s32.totalorder %s138, %s139
      %p148 = scmp.eq.s32.totalorder %s23, 0
      %p149 = por %p147, %p148
      %p150 = scmp.ne.s32.totalorder %s138, %s139
      %p151 = scmp.eq.s32.totalorder %s24, 1
      %p152 = por %p150, %p151
      %p154 = scmp.ne.s32.totalorder %s139, %s153
      %p155 = scmp.eq.s32.totalorder %s24, 0
      %p156 = por %p154, %p155
      %s157 = ssub.s32 %s18, %s25
      %p158 = scmp.eq.s32.totalorder %s157, 0
      %s160 = sadd.s32 %s159, 1
      %s161 = scalar_select %p158, %s159, %s160
      %p164 = pneg %p158
      %p165 = scmp.eq.s32.totalorder %s18, 1
      %p166 = por %p164, %p165
      %p167 = scmp.ne.s32.totalorder %s159, %s162
      %p168 = scmp.eq.s32.totalorder %s18, 0
      %p169 = por %p167, %p168
      %p170 = scmp.ne.s32.totalorder %s159, %s162
      %p171 = scmp.eq.s32.totalorder %s23, 1
      %p172 = por %p170, %p171
      %p173 = scmp.ne.s32.totalorder %s162, %s163
      %p174 = scmp.eq.s32.totalorder %s23, 0
      %p175 = por %p173, %p174
      %p176 = scmp.ne.s32.totalorder %s162, %s163
      %p177 = scmp.eq.s32.totalorder %s24, 1
      %p178 = por %p176, %p177
      %p180 = scmp.ne.s32.totalorder %s163, %s179
      %p181 = scmp.eq.s32.totalorder %s24, 0
      %p182 = por %p180, %p181
      %p183 = scmp.le.s32.totalorder 1, %s18
      %p184 = scmp.lt.s32.totalorder %s18, 3
      %p185 = pnand %p183, %p184
      %p186 = pneg %p185
      // Predicated region
      $region9: #{tpu_custom_call.1} parent=5 // pred_check
        _
      $region10: #{tpu_custom_call.1} parent=5 // pred_check_branch
        %188 = sbr.rel (%p185) target = $region12
      $region11: #{tpu_custom_call.1} parent=5 // pred_region
        %s189 = ssub.s32 %s18, 1
        // Predicated region
        $region13: #{tpu_custom_call.1} parent=11 // pred_check
          %p190 = pneg %p65
        $region14: #{tpu_custom_call.1} parent=11 // pred_check_branch
          %192 = sbr.rel (%p190) target = $region16
        $region15: #{tpu_custom_call.1} parent=11 // pred_region
          _
        $region16: #{tpu_custom_call.1} parent=11 // pred_fallthru
          _
        // Predicated region
        $region17: #{tpu_custom_call.1} parent=11 // pred_check
          %p193 = pneg %p86
        $region18: #{tpu_custom_call.1} parent=11 // pred_check_branch
          %195 = sbr.rel (%p193) target = $region20
        $region19: #{tpu_custom_call.1} parent=11 // pred_region
          _
        $region20: #{tpu_custom_call.1} parent=11 // pred_fallthru
          _
        // Predicated region
        $region21: #{tpu_custom_call.1} parent=11 // pred_check
          %p196 = pneg %p107
        $region22: #{tpu_custom_call.1} parent=11 // pred_check_branch
          %198 = sbr.rel (%p196) target = $region24
        $region23: #{tpu_custom_call.1} parent=11 // pred_region
          _
        $region24: #{tpu_custom_call.1} parent=11 // pred_fallthru
          _
        // Predicated region
        $region25: #{tpu_custom_call.1} parent=11 // pred_check
          %p199 = pneg %p128
        $region26: #{tpu_custom_call.1} parent=11 // pred_check_branch
          %201 = sbr.rel (%p199) target = $region28
        $region27: #{tpu_custom_call.1} parent=11 // pred_region
          _
        $region28: #{tpu_custom_call.1} parent=11 // pred_fallthru
          _
        // Predicated region
        $region29: #{tpu_custom_call.1} parent=11 // pred_check
          %p202 = pneg %p149
        $region30: #{tpu_custom_call.1} parent=11 // pred_check_branch
          %204 = sbr.rel (%p202) target = $region32
        $region31: #{tpu_custom_call.1} parent=11 // pred_region
          _
        $region32: #{tpu_custom_call.1} parent=11 // pred_fallthru
          _
      $region12: #{tpu_custom_call.1} parent=5 // pred_fallthru
        _
      %p205 = scmp.lt.s32.totalorder %s18, 2
      // Predicated region
      $region33: #{tpu_custom_call.1} parent=5 // pred_check
        %p206 = pneg %p205
      $region34: #{tpu_custom_call.1} parent=5 // pred_check_branch
        %208 = sbr.rel (%p206) target = $region36
      $region35: #{tpu_custom_call.1} parent=5 // pred_region
        // Predicated region
        $region37: #{tpu_custom_call.1} parent=35 // pred_check
          %p209 = pneg %p38
        $region38: #{tpu_custom_call.1} parent=35 // pred_check_branch
          %211 = sbr.rel (%p209) target = $region40
        $region39: #{tpu_custom_call.1} parent=35 // pred_region
          %s212 = sand.u32 %s28, 1
          %s213 = scalar_lea.sflag [#allocation6], %s212
          %s214 = sand.u32 %s28, 1
          %s215 = smul.addr %s214, 8
          %s216 = scalar_lea.vmem [#allocation5], %s215
          %s218 = ssub.s32 128, 128
          %219 = vsyncadd %s213, %s218
          %s220 = smul.addr %s18, 2
          %s221 = smul.addr %s220, 64
          %s222 = scalar_lea.hbm %s0, %s221
          %s224 = sshll.u32 %s216, 4
          %s225 = int_to_ptr.vmem [resolvable:$true] %s224
          %227 = dma.hbm_to_vmem [thread:$0]  %s222, 128, %s225, %s213
        $region40: #{tpu_custom_call.1} parent=35 // pred_fallthru
          _
      $region36: #{tpu_custom_call.1} parent=5 // pred_fallthru
        _
      %p228 = scmp.le.s32.totalorder 1, %s18
      %p229 = scmp.lt.s32.totalorder %s18, 3
      %p230 = pnand %p228, %p229
      %p231 = pneg %p230
      // Predicated region
      $region41: #{tpu_custom_call.1} parent=5 // pred_check
        _
      $region42: #{tpu_custom_call.1} parent=5 // pred_check_branch
        %233 = sbr.rel (%p230) target = $region44
      $region43: #{tpu_custom_call.1} parent=5 // pred_region
        %s234 = ssub.s32 %s18, 1
        %s235 = sand.u32 %s31, 1
        %s236 = scalar_lea.sflag [#allocation6], %s235
        %s237 = sand.u32 %s31, 1
        %s238 = smul.addr %s237, 8
        %s239 = scalar_lea.vmem [#allocation5], %s238
        // Predicated region
        $region45: #{tpu_custom_call.1} parent=43 // pred_check
          %p240 = pneg %p44
        $region46: #{tpu_custom_call.1} parent=43 // pred_check_branch
          %242 = sbr.rel (%p240) target = $region48
        $region47: #{tpu_custom_call.1} parent=43 // pred_region
          %243 = dma.done %s236, 128
        $region48: #{tpu_custom_call.1} parent=43 // pred_fallthru
          _
        %s244 = sand.u32 %s31, 1
        %s245 = scalar_lea.sflag [#allocation6], %s244
        %s246 = sand.u32 %s31, 1
        %s247 = smul.addr %s246, 8
        %s248 = scalar_lea.vmem [#allocation5], %s247
        %p249 = pneg %p44
        %p250 = pneg %p41
        %p251 = pneg %p65
        %p252 = pneg %p62
        %p253 = pneg %p86
        %p254 = pneg %p83
        %p255 = pneg %p107
        %p256 = pneg %p104
        %p257 = pneg %p128
        %p258 = pneg %p125
        %p259 = pneg %p149
        %p260 = pneg %p146
        %p261 = pneg %p175
        %p262 = pneg %p172
        %s263 = sand.u32 %s162, 1
        %s264 = scalar_lea.sflag [#allocation7], %s263
        %s265 = sand.u32 %s162, 1
        %s266 = smul.addr %s265, 16
        %s267 = scalar_lea.vmem [#allocation8], %s266
        %v269 = vld [vmem:[%s5] sm:$0x3]
        %vm270 = vcmask 134144
        %271 = vst.msk [vmem:[#allocation2] sm:$0xf] %vm270, 0
        %vm272 = vcmask 273544
        %273 = vst.msk [vmem:[#allocation2 + $0x8] sm:$0xf] %vm272, 0
        %274 = vst.msk [vmem:[#allocation3] sm:$0xf] %vm270, 0
        %275 = vst.msk [vmem:[#allocation3 + $0x8] sm:$0xf] %vm272, 0
        %276 = vst [vmem:[#allocation2] sm:$0xcc] 0
        %vm277 = vcmask 273410
        %278 = vst.msk [vmem:[#allocation2 + $0x8] sm:$0xc] %vm277, 0
        %v279 = vld [vmem:[%s239] sm:$0xff]
        %v281 = vcombine.high %v279, %v279
        %v283 = vpack.c.bf16 %v279, %v279
        %v284 = vpack.c.bf16 %v281, %v281
        %v287 = vunpack.c.l.b16 %v283
        %v288 = vunpack.c.l.b16 %v284
        %v289 = vpack.c.b16 %v288, %v287
        %290 = vrot.lane.b32.xlu0 %v289, 17
        %v291 = vpop.permute.xlu0 %290
        %v292 = vrot.slane %v291, 4
        %vm293 = vcmask 138240
        %v294 = vsel %vm293, %v292, %v291
        %vm297 = vcmask 1041544
        %vm298 = vcmask 1045508
        %vm299 = vmor %vm298, %vm297
        %300 = vst.msk [vmem:[#allocation2] sm:$0x33] %vm299, %v294
        %vm301 = vcmask 132096
        %302 = vst.msk [vmem:[#allocation2 + $0x8] sm:$0x3] %vm301, %v292
        %v303 = vld [vmem:[%s4] sm:$0xff]
        %v304 = vld [vmem:[#allocation2] sm:$0xff]
        %v307 = vunpack.c.l.s4 1966171168
        %v308 = vunpack.c.0.s8 %v307
        %v309 = vlaneseq
        %v310 = vshrl.u32 %v309, 7
        %v311 = vsub.s32 %v308, %v310
        %v312 = vrot.slane %v269, %v311
        %v313 = vcombine.high %v312, %v312
        %v315 = vunpack.c.l.s4 1966171168
        %v316 = vunpack.c.0.s8 %v315
        %v317 = vlaneseq
        %v318 = vshrl.u32 %v317, 7
        %v319 = vsub.s32 %v316, %v318
        %v320 = vrot.slane %v312, %v319
        %v322 = vunpack.c.l.s4 1966171168
        %v323 = vunpack.c.0.s8 %v322
        %v324 = vlaneseq
        %v325 = vshrl.u32 %v324, 7
        %v326 = vsub.s32 %v323, %v325
        %v327 = vrot.slane %v313, %v326
        %v329 = vpack.i.b16 %v320, %v320
        %v331 = vlaneseq
        %v332 = vshrl.u32 %v331, 7
        %v333 = vsub.s32 0, %v332
        %v334 = vrot.slane %v329, %v333
        %v336 = vpack.i.b16 %v327, %v327
        %v338 = vlaneseq
        %v339 = vshrl.u32 %v338, 7
        %v340 = vsub.s32 0, %v339
        %v341 = vrot.slane %v336, %v340
        %v344 = vunpack.c.l.b16 %v334
        %v345 = vunpack.c.l.b16 %v341
        %v346 = vpack.c.b16 %v345, %v344
        %v348 = vmul.bf16 %v304, %v346
        %349 = vst [vmem:[#allocation4] sm:$0xff] %v348
        %v350 = vld [vmem:[#allocation2] sm:$0xff]
        %v351 = vld [vmem:[#allocation2 + $0x8] sm:$0xf]
        %354 = vrot.lane.b32.xlu0 %v350, 127
        %v355 = vpop.permute.xlu0 %354
        %356 = vrot.lane.b32.xlu0 %v351, 127
        %v357 = vpop.permute.xlu0 %356
        %v358 = vrot.slane %v355, 4
        %v359 = vrot.slane %v357, 4
        %vm360 = vcmask 1043456
        %v361 = vsel %vm360, %v358, %v359
        %vm362 = vcmask 1039360
        %v363 = vsel %vm362, %v355, %v361
        %365 = vst [vmem:[#allocation4 + $0x8] sm:$0xff] %v363
        %v366 = vld [vmem:[#allocation2] sm:$0xff]
        %v367 = vld [vmem:[#allocation2 + $0x8] sm:$0xf]
        %v368 = vshrl.u32 %v320, 16
        %v369 = vpack.i.b16 %v368, %v368
        %v371 = vlaneseq
        %v372 = vshrl.u32 %v371, 7
        %v373 = vsub.s32 0, %v372
        %v374 = vrot.slane %v369, %v373
        %v375 = vshrl.u32 %v327, 16
        %v376 = vpack.i.b16 %v375, %v375
        %v378 = vlaneseq
        %v379 = vshrl.u32 %v378, 7
        %v380 = vsub.s32 0, %v379
        %v381 = vrot.slane %v376, %v380
        %v384 = vunpack.c.l.b16 %v374
        %v385 = vunpack.c.l.b16 %v381
        %v386 = vpack.c.b16 %v385, %v384
        %387 = vrot.lane.b32.xlu0 %v386, 2
        %v388 = vpop.permute.xlu0 %387
        %v389 = vrot.slane %v388, 4
        %vm390 = vcmask 15360
        %v391 = vsel %vm390, %v389, %v388
        %v394 = vmul.bf16 %v366, %v391
        %v395 = vmul.bf16 %v367, %v389
        %398 = vrot.lane.b32.xlu0 %v394, 126
        %v399 = vpop.permute.xlu0 %398
        %400 = vrot.lane.b32.xlu0 %v395, 126
        %v401 = vpop.permute.xlu0 %400
        %v402 = vrot.slane %v399, 4
        %v403 = vrot.slane %v401, 4
        %v404 = vsel %vm360, %v402, %v403
        %vm405 = vcmask 1031168
        %v406 = vsel %vm405, %v399, %v404
        %408 = vst [vmem:[#allocation4 + $0x10] sm:$0xff] %v406
        %v409 = vld [vmem:[#allocation2] sm:$0xff]
        %v410 = vld [vmem:[#allocation2 + $0x8] sm:$0xf]
        %411 = vrot.lane.b32.xlu0 %v346, 16
        %v412 = vpop.permute.xlu0 %411
        %v413 = vrot.slane %v412, 4
        %vm414 = vcmask 130048
        %v415 = vsel %vm414, %v413, %v412
        %v418 = vmul.bf16 %v409, %v415
        %v419 = vmul.bf16 %v410, %v413
        %422 = vrot.lane.b32.xlu0 %v418, 112
        %v423 = vpop.permute.xlu0 %422
        %424 = vrot.lane.b32.xlu0 %v419, 112
        %v425 = vpop.permute.xlu0 %424
        %v426 = vrot.slane %v423, 4
        %v427 = vrot.slane %v425, 4
        %v428 = vsel %vm360, %v426, %v427
        %vm429 = vcmask 916480
        %v430 = vsel %vm429, %v423, %v428
        %432 = vst [vmem:[#allocation4 + $0x18] sm:$0xff] %v430
        %v433 = vld [vmem:[#allocation2] sm:$0xff]
        %v434 = vld [vmem:[#allocation2 + $0x8] sm:$0xf]
        %437 = vrot.lane.b32.xlu0 %v433, 111
        %v438 = vpop.permute.xlu0 %437
        %439 = vrot.lane.b32.xlu0 %v434, 111
        %v440 = vpop.permute.xlu0 %439
        %v441 = vrot.slane %v438, 4
        %v442 = vrot.slane %v440, 4
        %v443 = vsel %vm360, %v441, %v442
        %vm444 = vcmask 908288
        %v445 = vsel %vm444, %v438, %v443
        %447 = vst [vmem:[#allocation4 + $0x20] sm:$0xff] %v445
        %v448 = vld [vmem:[#allocation2] sm:$0xff]
        %v449 = vld [vmem:[#allocation2 + $0x8] sm:$0xf]
        %450 = vrot.lane.b32.xlu0 %v386, 18
        %v451 = vpop.permute.xlu0 %450
        %v452 = vrot.slane %v451, 4
        %vm453 = vcmask 146432
        %v454 = vsel %vm453, %v452, %v451
        %v457 = vmul.bf16 %v448, %v454
        %v458 = vmul.bf16 %v449, %v452
        %461 = vrot.lane.b32.xlu0 %v457, 110
        %v462 = vpop.permute.xlu0 %461
        %463 = vrot.lane.b32.xlu0 %v458, 110
        %v464 = vpop.permute.xlu0 %463
        %v465 = vrot.slane %v462, 4
        %v466 = vrot.slane %v464, 4
        %v467 = vsel %vm360, %v465, %v466
        %vm468 = vcmask 900096
        %v469 = vsel %vm468, %v462, %v467
        %471 = vst [vmem:[#allocation4 + $0x28] sm:$0xff] %v469
        %v472 = vld [vmem:[#allocation2] sm:$0xff]
        %v473 = vld [vmem:[#allocation2 + $0x8] sm:$0xf]
        %474 = vrot.lane.b32.xlu0 %v346, 32
        %v475 = vpop.permute.xlu0 %474
        %v476 = vrot.slane %v475, 4
        %vm477 = vcmask 261120
        %v478 = vsel %vm477, %v476, %v475
        %v481 = vmul.bf16 %v472, %v478
        %v482 = vmul.bf16 %v473, %v476
        %485 = vrot.lane.b32.xlu0 %v481, 96
        %v486 = vpop.permute.xlu0 %485
        %487 = vrot.lane.b32.xlu0 %v482, 96
        %v488 = vpop.permute.xlu0 %487
        %v489 = vrot.slane %v486, 4
        %v490 = vrot.slane %v488, 4
        %v491 = vsel %vm360, %v489, %v490
        %vm492 = vcmask 785408
        %v493 = vsel %vm492, %v486, %v491
        %495 = vst [vmem:[#allocation4 + $0x30] sm:$0xff] %v493
        %v496 = vld [vmem:[#allocation2] sm:$0xff]
        %v497 = vld [vmem:[#allocation2 + $0x8] sm:$0xf]
        %500 = vrot.lane.b32.xlu0 %v496, 95
        %v501 = vpop.permute.xlu0 %500
        %502 = vrot.lane.b32.xlu0 %v497, 95
        %v503 = vpop.permute.xlu0 %502
        %v504 = vrot.slane %v501, 4
        %v505 = vrot.slane %v503, 4
        %v506 = vsel %vm360, %v504, %v505
        %vm507 = vcmask 777216
        %v508 = vsel %vm507, %v501, %v506
        %510 = vst [vmem:[#allocation4 + $0x38] sm:$0xff] %v508
        %v511 = vld [vmem:[#allocation2] sm:$0xff]
        %v512 = vld [vmem:[#allocation2 + $0x8] sm:$0xf]
        %513 = vrot.lane.b32.xlu0 %v386, 34
        %v514 = vpop.permute.xlu0 %513
        %v515 = vrot.slane %v514, 4
        %vm516 = vcmask 277504
        %v517 = vsel %vm516, %v515, %v514
        %v520 = vmul.bf16 %v511, %v517
        %v521 = vmul.bf16 %v512, %v515
        %524 = vrot.lane.b32.xlu0 %v520, 94
        %v525 = vpop.permute.xlu0 %524
        %526 = vrot.lane.b32.xlu0 %v521, 94
        %v527 = vpop.permute.xlu0 %526
        %v528 = vrot.slane %v525, 4
        %v529 = vrot.slane %v527, 4
        %v530 = vsel %vm360, %v528, %v529
        %vm531 = vcmask 769024
        %v532 = vsel %vm531, %v525, %v530
        %534 = vst [vmem:[#allocation4 + $0x40] sm:$0xff] %v532
        %v535 = vld [vmem:[%s1] sm:$0xf]
        %v536 = vld [vmem:[#allocation4] sm:$0xff]
        %v537 = vld [vmem:[#allocation4 + $0x8] sm:$0xff]
        %v538 = vld [vmem:[#allocation4 + $0x10] sm:$0xff]
        %v539 = vld [vmem:[#allocation4 + $0x18] sm:$0xff]
        %v540 = vld [vmem:[#allocation4 + $0x20] sm:$0xff]
        %v541 = vld [vmem:[#allocation4 + $0x28] sm:$0xff]
        %v542 = vld [vmem:[#allocation4 + $0x30] sm:$0xff]
        %v543 = vld [vmem:[#allocation4 + $0x38] sm:$0xff]
        %v544 = vld [vmem:[#allocation4 + $0x40] sm:$0xff]
        %546 = vset.pattern.permute.xlu0 0
        %547 = vperm.xlu0 %546, %v303
        %v548 = vpop.permute.xlu0 %547
        %v559 = vunpack.c.l.b16 %v536
        %v560 = vunpack.c.h.b16 %v536
        %v561 = vunpack.c.l.b16 %v537
        %v562 = vunpack.c.h.b16 %v537
        %v563 = vunpack.c.l.b16 %v538
        %v564 = vunpack.c.h.b16 %v538
        %v565 = vunpack.c.l.b16 %v539
        %v566 = vunpack.c.h.b16 %v539
        %v567 = vunpack.c.l.b16 %v540
        %v568 = vunpack.c.h.b16 %v540
        %v569 = vunpack.c.l.b16 %v541
        %v570 = vunpack.c.h.b16 %v541
        %v571 = vunpack.c.l.b16 %v542
        %v572 = vunpack.c.h.b16 %v542
        %v573 = vunpack.c.l.b16 %v543
        %v574 = vunpack.c.h.b16 %v543
        %v575 = vunpack.c.l.b16 %v544
        %v576 = vunpack.c.h.b16 %v544
        %v577 = vpack.c.b16 %v561, %v559
        %v578 = vpack.c.b16 %v562, %v560
        %v579 = vpack.c.b16 %v565, %v563
        %v580 = vpack.c.b16 %v566, %v564
        %v581 = vpack.c.b16 %v569, %v567
        %v582 = vpack.c.b16 %v570, %v568
        %v583 = vpack.c.b16 %v573, %v571
        %v584 = vpack.c.b16 %v574, %v572
        %v585 = vpack.c.b16 %v575, %v575
        %v586 = vpack.c.b16 %v576, %v576
        %vm595 = vcmask 588800
        %v597 = vsel %vm595, %v535, 0
        %vm599 = vcmask 1043456
        %v601 = vsel %vm599, %v585, 0
        %v604 = vsel %vm599, %v586, 0
        %606 = vmatprep.subr.bf16.mxu0 %v578
        %607 = vmatpush1.bf16.msra.mxu0 %v577
        %608 = vmatprep.subr.bf16.mxu0 %v580
        %609 = vmatpush1.bf16.msra.mxu0 %v579
        %610 = vmatprep.subr.bf16.mxu0 %v582
        %611 = vmatpush1.bf16.msra.mxu0 %v581
        %612 = vmatprep.subr.bf16.mxu0 %v584
        %613 = vmatpush1.bf16.msra.mxu0 %v583
        %614 = vmatprep.subr.bf16.mxu0 %v604
        %615 = vmatpush1.bf16.msra.mxu0 %v601
        %616 = vmatprep.subr.bf16.mxu0 0
        %617 = vmatpush1.bf16.msra.mxu0 0
        %618 = vmatprep.subr.bf16.mxu0 0
        %619 = vmatpush1.bf16.msra.mxu0 0
        %620 = vmatprep.subr.bf16.mxu0 0
        %621 = vmatpush1.bf16.msra.mxu0 0
        %622 = vmatprep.subr.bf16.mxu0 0
        %623 = vmatpush1.bf16.msra.mxu0 0
        %624 = vmatprep.subr.bf16.mxu0 0
        %625 = vmatpush1.bf16.msra.mxu0 0
        %626 = vmatprep.subr.bf16.mxu0 0
        %627 = vmatpush1.bf16.msra.mxu0 0
        %628 = vmatprep.subr.bf16.mxu0 0
        %629 = vmatpush1.bf16.msra.mxu0 0
        %630 = vmatprep.subr.bf16.mxu0 0
        %631 = vmatpush1.bf16.msra.mxu0 0
        %632 = vmatprep.subr.bf16.mxu0 0
        %633 = vmatpush1.bf16.msra.mxu0 0
        %634 = vmatprep.subr.bf16.mxu0 0
        %635 = vmatpush1.bf16.msra.mxu0 0
        %636 = vmatprep.subr.bf16.mxu0 0
        %637 = vmatpush1.bf16.msra.mxu0 0
        %638 = vmatprep.mubr.bf16.mxu0 0
        %639 = vmatmul.mubr.bf16.gmra.mrb[0].mxu0 %v597
        %v640 = vpop.f32.mrb[0].mxu0
        %v641 = vadd.f32 %v548, %v640
        %v642 = vpop.f32.mrb[0].mxu0
        %v643 = vadd.f32 %v548, %v642
        %v644 = vpop.f32.mrb[0].mxu0
        %v645 = vpop.f32.mrb[0].mxu0
        %646 = vdwg.mxu0
        %v647 = vmax.f32 %v641, 0.0
        %v648 = vmax.f32 %v643, 0.0
        %v649 = vpack.c.bf16 %v647, %v647
        %v650 = vpack.c.bf16 %v648, %v648
        %v653 = vunpack.c.l.b16 %v649
        %v654 = vunpack.c.l.b16 %v650
        %v655 = vpack.c.b16 %v654, %v653
        %656 = vrot.lane.b32.xlu0 %v655, 17
        %v657 = vpop.permute.xlu0 %656
        %v658 = vrot.slane %v657, 4
        %v659 = vsel %vm293, %v658, %v657
        %vm662 = vcmask 1043592
        %vm663 = vcmask 1047556
        %vm664 = vmor %vm663, %vm662
        %665 = vst.msk [vmem:[#allocation3] sm:$0xff] %vm664, %v659
        %666 = vst.msk [vmem:[#allocation3 + $0x8] sm:$0xf] %vm270, %v658
        %v667 = vld [vmem:[#allocation3] sm:$0xff]
        %v668 = vmul.bf16 %v667, %v346
        %669 = vst [vmem:[#allocation4] sm:$0xff] %v668
        %v670 = vld [vmem:[#allocation3] sm:$0xff]
        %v671 = vld [vmem:[#allocation3 + $0x8] sm:$0xf]
        %674 = vrot.lane.b32.xlu0 %v670, 127
        %v675 = vpop.permute.xlu0 %674
        %676 = vrot.lane.b32.xlu0 %v671, 127
        %v677 = vpop.permute.xlu0 %676
        %v678 = vrot.slane %v675, 4
        %v679 = vrot.slane %v677, 4
        %v680 = vsel %vm360, %v678, %v679
        %v681 = vsel %vm362, %v675, %v680
        %683 = vst [vmem:[#allocation4 + $0x8] sm:$0xff] %v681
        %v684 = vld [vmem:[#allocation3] sm:$0xff]
        %v685 = vld [vmem:[#allocation3 + $0x8] sm:$0xf]
        %v686 = vmul.bf16 %v684, %v391
        %v687 = vmul.bf16 %v685, %v389
        %690 = vrot.lane.b32.xlu0 %v686, 126
        %v691 = vpop.permute.xlu0 %690
        %692 = vrot.lane.b32.xlu0 %v687, 126
        %v693 = vpop.permute.xlu0 %692
        %v694 = vrot.slane %v691, 4
        %v695 = vrot.slane %v693, 4
        %v696 = vsel %vm360, %v694, %v695
        %v697 = vsel %vm405, %v691, %v696
        %699 = vst [vmem:[#allocation4 + $0x10] sm:$0xff] %v697
        %v700 = vld [vmem:[#allocation3] sm:$0xff]
        %v701 = vld [vmem:[#allocation3 + $0x8] sm:$0xf]
        %v702 = vmul.bf16 %v700, %v415
        %v703 = vmul.bf16 %v701, %v413
        %706 = vrot.lane.b32.xlu0 %v702, 112
        %v707 = vpop.permute.xlu0 %706
        %708 = vrot.lane.b32.xlu0 %v703, 112
        %v709 = vpop.permute.xlu0 %708
        %v710 = vrot.slane %v707, 4
        %v711 = vrot.slane %v709, 4
        %v712 = vsel %vm360, %v710, %v711
        %v713 = vsel %vm429, %v707, %v712
        %715 = vst [vmem:[#allocation4 + $0x18] sm:$0xff] %v713
        %v716 = vld [vmem:[#allocation3] sm:$0xff]
        %v717 = vld [vmem:[#allocation3 + $0x8] sm:$0xf]
        %720 = vrot.lane.b32.xlu0 %v716, 111
        %v721 = vpop.permute.xlu0 %720
        %722 = vrot.lane.b32.xlu0 %v717, 111
        %v723 = vpop.permute.xlu0 %722
        %v724 = vrot.slane %v721, 4
        %v725 = vrot.slane %v723, 4
        %v726 = vsel %vm360, %v724, %v725
        %v727 = vsel %vm444, %v721, %v726
        %729 = vst [vmem:[#allocation4 + $0x20] sm:$0xff] %v727
        %v730 = vld [vmem:[#allocation3] sm:$0xff]
        %v731 = vld [vmem:[#allocation3 + $0x8] sm:$0xf]
        %v732 = vmul.bf16 %v730, %v454
        %v733 = vmul.bf16 %v731, %v452
        %736 = vrot.lane.b32.xlu0 %v732, 110
        %v737 = vpop.permute.xlu0 %736
        %738 = vrot.lane.b32.xlu0 %v733, 110
        %v739 = vpop.permute.xlu0 %738
        %v740 = vrot.slane %v737, 4
        %v741 = vrot.slane %v739, 4
        %v742 = vsel %vm360, %v740, %v741
        %v743 = vsel %vm468, %v737, %v742
        %745 = vst [vmem:[#allocation4 + $0x28] sm:$0xff] %v743
        %v746 = vld [vmem:[#allocation3] sm:$0xff]
        %v747 = vld [vmem:[#allocation3 + $0x8] sm:$0xf]
        %v748 = vmul.bf16 %v746, %v478
        %v749 = vmul.bf16 %v747, %v476
        %752 = vrot.lane.b32.xlu0 %v748, 96
        %v753 = vpop.permute.xlu0 %752
        %754 = vrot.lane.b32.xlu0 %v749, 96
        %v755 = vpop.permute.xlu0 %754
        %v756 = vrot.slane %v753, 4
        %v757 = vrot.slane %v755, 4
        %v758 = vsel %vm360, %v756, %v757
        %v759 = vsel %vm492, %v753, %v758
        %761 = vst [vmem:[#allocation4 + $0x30] sm:$0xff] %v759
        %v762 = vld [vmem:[#allocation3] sm:$0xff]
        %v763 = vld [vmem:[#allocation3 + $0x8] sm:$0xf]
        %766 = vrot.lane.b32.xlu0 %v762, 95
        %v767 = vpop.permute.xlu0 %766
        %768 = vrot.lane.b32.xlu0 %v763, 95
        %v769 = vpop.permute.xlu0 %768
        %v770 = vrot.slane %v767, 4
        %v771 = vrot.slane %v769, 4
        %v772 = vsel %vm360, %v770, %v771
        %v773 = vsel %vm507, %v767, %v772
        %775 = vst [vmem:[#allocation4 + $0x38] sm:$0xff] %v773
        %v776 = vld [vmem:[#allocation3] sm:$0xff]
        %v777 = vld [vmem:[#allocation3 + $0x8] sm:$0xf]
        %v778 = vmul.bf16 %v776, %v517
        %v779 = vmul.bf16 %v777, %v515
        %782 = vrot.lane.b32.xlu0 %v778, 94
        %v783 = vpop.permute.xlu0 %782
        %784 = vrot.lane.b32.xlu0 %v779, 94
        %v785 = vpop.permute.xlu0 %784
        %v786 = vrot.slane %v783, 4
        %v787 = vrot.slane %v785, 4
        %v788 = vsel %vm360, %v786, %v787
        %v789 = vsel %vm531, %v783, %v788
        %791 = vst [vmem:[#allocation4 + $0x40] sm:$0xff] %v789
        %v792 = vld [vmem:[%s2] sm:$0xf]
        %v793 = vld [vmem:[#allocation4] sm:$0xff]
        %v794 = vld [vmem:[#allocation4 + $0x8] sm:$0xff]
        %v795 = vld [vmem:[#allocation4 + $0x10] sm:$0xff]
        %v796 = vld [vmem:[#allocation4 + $0x18] sm:$0xff]
        %v797 = vld [vmem:[#allocation4 + $0x20] sm:$0xff]
        %v798 = vld [vmem:[#allocation4 + $0x28] sm:$0xff]
        %v799 = vld [vmem:[#allocation4 + $0x30] sm:$0xff]
        %v800 = vld [vmem:[#allocation4 + $0x38] sm:$0xff]
        %v801 = vld [vmem:[#allocation4 + $0x40] sm:$0xff]
        %802 = vset.pattern.permute.xlu0 1
        %803 = vperm.xlu0 %802, %v303
        %v804 = vpop.permute.xlu0 %803
        %v815 = vunpack.c.l.b16 %v793
        %v816 = vunpack.c.h.b16 %v793
        %v817 = vunpack.c.l.b16 %v794
        %v818 = vunpack.c.h.b16 %v794
        %v819 = vunpack.c.l.b16 %v795
        %v820 = vunpack.c.h.b16 %v795
        %v821 = vunpack.c.l.b16 %v796
        %v822 = vunpack.c.h.b16 %v796
        %v823 = vunpack.c.l.b16 %v797
        %v824 = vunpack.c.h.b16 %v797
        %v825 = vunpack.c.l.b16 %v798
        %v826 = vunpack.c.h.b16 %v798
        %v827 = vunpack.c.l.b16 %v799
        %v828 = vunpack.c.h.b16 %v799
        %v829 = vunpack.c.l.b16 %v800
        %v830 = vunpack.c.h.b16 %v800
        %v831 = vunpack.c.l.b16 %v801
        %v832 = vunpack.c.h.b16 %v801
        %v833 = vpack.c.b16 %v817, %v815
        %v834 = vpack.c.b16 %v818, %v816
        %v835 = vpack.c.b16 %v821, %v819
        %v836 = vpack.c.b16 %v822, %v820
        %v837 = vpack.c.b16 %v825, %v823
        %v838 = vpack.c.b16 %v826, %v824
        %v839 = vpack.c.b16 %v829, %v827
        %v840 = vpack.c.b16 %v830, %v828
        %v841 = vpack.c.b16 %v831, %v831
        %v842 = vpack.c.b16 %v832, %v832
        %v852 = vsel %vm595, %v792, 0
        %v855 = vsel %vm599, %v841, 0
        %v858 = vsel %vm599, %v842, 0
        %860 = vmatprep.subr.bf16.mxu0 %v834
        %861 = vmatpush1.bf16.msra.mxu0 %v833
        %862 = vmatprep.subr.bf16.mxu0 %v836
        %863 = vmatpush1.bf16.msra.mxu0 %v835
        %864 = vmatprep.subr.bf16.mxu0 %v838
        %865 = vmatpush1.bf16.msra.mxu0 %v837
        %866 = vmatprep.subr.bf16.mxu0 %v840
        %867 = vmatpush1.bf16.msra.mxu0 %v839
        %868 = vmatprep.subr.bf16.mxu0 %v858
        %869 = vmatpush1.bf16.msra.mxu0 %v855
        %870 = vmatprep.subr.bf16.mxu0 0
        %871 = vmatpush1.bf16.msra.mxu0 0
        %872 = vmatprep.subr.bf16.mxu0 0
        %873 = vmatpush1.bf16.msra.mxu0 0
        %874 = vmatprep.subr.bf16.mxu0 0
        %875 = vmatpush1.bf16.msra.mxu0 0
        %876 = vmatprep.subr.bf16.mxu0 0
        %877 = vmatpush1.bf16.msra.mxu0 0
        %878 = vmatprep.subr.bf16.mxu0 0
        %879 = vmatpush1.bf16.msra.mxu0 0
        %880 = vmatprep.subr.bf16.mxu0 0
        %881 = vmatpush1.bf16.msra.mxu0 0
        %882 = vmatprep.subr.bf16.mxu0 0
        %883 = vmatpush1.bf16.msra.mxu0 0
        %884 = vmatprep.subr.bf16.mxu0 0
        %885 = vmatpush1.bf16.msra.mxu0 0
        %886 = vmatprep.subr.bf16.mxu0 0
        %887 = vmatpush1.bf16.msra.mxu0 0
        %888 = vmatprep.subr.bf16.mxu0 0
        %889 = vmatpush1.bf16.msra.mxu0 0
        %890 = vmatprep.subr.bf16.mxu0 0
        %891 = vmatpush1.bf16.msra.mxu0 0
        %892 = vmatprep.mubr.bf16.mxu0 0
        %893 = vmatmul.mubr.bf16.gmra.mrb[0].mxu0 %v852
        %v894 = vpop.f32.mrb[0].mxu0
        %v895 = vadd.f32 %v804, %v894
        %v896 = vpop.f32.mrb[0].mxu0
        %v897 = vadd.f32 %v804, %v896
        %v898 = vpop.f32.mrb[0].mxu0
        %v899 = vpop.f32.mrb[0].mxu0
        %900 = vdwg.mxu0
        %v901 = vld [vmem:[%s3] sm:$0xf]
        %v902 = vld [vmem:[#allocation2] sm:$0xff]
        %v903 = vld [vmem:[#allocation2 + $0x8] sm:$0xf]
        %904 = vset.pattern.permute.xlu0 2
        %905 = vperm.xlu0 %904, %v303
        %v906 = vpop.permute.xlu0 %905
        %v910 = vunpack.c.l.b16 %v902
        %v911 = vunpack.c.h.b16 %v902
        %v912 = vunpack.c.l.b16 %v903
        %v913 = vpack.c.b16 %v910, %v910
        %v914 = vpack.c.b16 %v911, %v911
        %v915 = vpack.c.b16 %v912, %v912
        %916 = vrot.lane.b32.xlu0 %v913, 111
        %v917 = vpop.permute.xlu0 %916
        %918 = vrot.lane.b32.xlu0 %v914, 111
        %v919 = vpop.permute.xlu0 %918
        %920 = vrot.lane.b32.xlu0 %v915, 111
        %v921 = vpop.permute.xlu0 %920
        %v922 = vsel %vm444, %v917, %v919
        %v923 = vsel %vm444, %v919, %v921
        %vm924 = vcmask 64512
        %v926 = vsel %vm924, %v901, 0
        %v929 = vsel %vm599, %v922, 0
        %v932 = vsel %vm599, %v923, 0
        %934 = vmatprep.subr.bf16.mxu0 %v932
        %935 = vmatpush1.bf16.msra.mxu0 %v929
        %936 = vmatprep.subr.bf16.mxu0 0
        %937 = vmatpush1.bf16.msra.mxu0 0
        %938 = vmatprep.subr.bf16.mxu0 0
        %939 = vmatpush1.bf16.msra.mxu0 0
        %940 = vmatprep.subr.bf16.mxu0 0
        %941 = vmatpush1.bf16.msra.mxu0 0
        %942 = vmatprep.subr.bf16.mxu0 0
        %943 = vmatpush1.bf16.msra.mxu0 0
        %944 = vmatprep.subr.bf16.mxu0 0
        %945 = vmatpush1.bf16.msra.mxu0 0
        %946 = vmatprep.subr.bf16.mxu0 0
        %947 = vmatpush1.bf16.msra.mxu0 0
        %948 = vmatprep.subr.bf16.mxu0 0
        %949 = vmatpush1.bf16.msra.mxu0 0
        %950 = vmatprep.subr.bf16.mxu0 0
        %951 = vmatpush1.bf16.msra.mxu0 0
        %952 = vmatprep.subr.bf16.mxu0 0
        %953 = vmatpush1.bf16.msra.mxu0 0
        %954 = vmatprep.subr.bf16.mxu0 0
        %955 = vmatpush1.bf16.msra.mxu0 0
        %956 = vmatprep.subr.bf16.mxu0 0
        %957 = vmatpush1.bf16.msra.mxu0 0
        %958 = vmatprep.subr.bf16.mxu0 0
        %959 = vmatpush1.bf16.msra.mxu0 0
        %960 = vmatprep.subr.bf16.mxu0 0
        %961 = vmatpush1.bf16.msra.mxu0 0
        %962 = vmatprep.subr.bf16.mxu0 0
        %963 = vmatpush1.bf16.msra.mxu0 0
        %964 = vmatprep.subr.bf16.mxu0 0
        %965 = vmatpush1.bf16.msra.mxu0 0
        %966 = vmatprep.mubr.bf16.mxu0 0
        %967 = vmatmul.mubr.bf16.gmra.mrb[0].mxu0 %v926
        %v968 = vpop.f32.mrb[0].mxu0
        %v969 = vadd.f32 %v906, %v968
        %v970 = vpop.f32.mrb[0].mxu0
        %v971 = vadd.f32 %v906, %v970
        %v972 = vpop.f32.mrb[0].mxu0
        %v973 = vpop.f32.mrb[0].mxu0
        %974 = vdwg.mxu0
        %v975 = vadd.f32 %v895, %v969
        %v976 = vadd.f32 %v897, %v971
        %v977 = vmax.f32 %v975, 0.0
        %v978 = vmax.f32 %v976, 0.0
        %979 = vst [vmem:[%s267] sm:$0xff] %v977
        %980 = vst [vmem:[%s267 + $0x8] sm:$0xff] %v978
        %s981 = sand.u32 %s162, 1
        %s982 = scalar_lea.sflag [#allocation7], %s981
        %s983 = sand.u32 %s162, 1
        %s984 = smul.addr %s983, 16
        %s985 = scalar_lea.vmem [#allocation8], %s984
        // Predicated region
        $region49: #{tpu_custom_call.1} parent=43 // pred_check
          %p986 = pneg %p172
        $region50: #{tpu_custom_call.1} parent=43 // pred_check_branch
          %988 = sbr.rel (%p986) target = $region52
        $region51: #{tpu_custom_call.1} parent=43 // pred_region
          %s990 = ssub.s32 256, 256
          %991 = vsyncadd %s982, %s990
          %s992 = smul.addr %s23, 2
          %s993 = smul.addr %s992, 128
          %s994 = scalar_lea.hbm %s6, %s993
          %s996 = sshll.u32 %s985, 4
          %s997 = int_to_ptr.vmem [resolvable:$true] %s996
          %999 = dma.vmem_to_hbm [thread:$0]  %s997, 256, %s994, %s982
        $region52: #{tpu_custom_call.1} parent=43 // pred_fallthru
          _
      $region44: #{tpu_custom_call.1} parent=5 // pred_fallthru
        _
      %p1000 = scmp.le.s32.totalorder 2, %s18
      // Predicated region
      $region53: #{tpu_custom_call.1} parent=5 // pred_check
        %p1001 = pneg %p1000
      $region54: #{tpu_custom_call.1} parent=5 // pred_check_branch
        %1003 = sbr.rel (%p1001) target = $region56
      $region55: #{tpu_custom_call.1} parent=5 // pred_region
        %s1004 = ssub.s32 %s18, 2
        // Predicated region
        $region57: #{tpu_custom_call.1} parent=55 // pred_check
          %p1005 = pneg %p178
        $region58: #{tpu_custom_call.1} parent=55 // pred_check_branch
          %1007 = sbr.rel (%p1005) target = $region60
        $region59: #{tpu_custom_call.1} parent=55 // pred_region
          %s1008 = sand.u32 %s163, 1
          %s1009 = scalar_lea.sflag [#allocation7], %s1008
          %s1010 = sand.u32 %s163, 1
          %s1011 = smul.addr %s1010, 16
          %s1012 = scalar_lea.vmem [#allocation8], %s1011
          %1013 = dma.done %s1009, 256
        $region60: #{tpu_custom_call.1} parent=55 // pred_fallthru
          _
      $region56: #{tpu_custom_call.1} parent=5 // pred_fallthru
        _
    $region6: #{tpu_custom_call.1} parent=1 // loop_footer
      %s22 = sadd.s32 1, %s18
    $region7: #{tpu_custom_call.1} parent=1 // loop_footer_branch
      %17 = sbr.rel target = $region3
    $region8: #{tpu_custom_call.1} parent=1 // loop_exit
      _
    %1014 = vsyncpa [#allocation6], 1
    %s1015 = scalar_lea.sflag [#allocation6], 1
    %1016 = vsyncpa %s1015, 1
    %1017 = vsyncpa [#allocation7], 1
    %s1018 = scalar_lea.sflag [#allocation7], 1
    %1019 = vsyncpa %s1018, 1

</llo_original>
